<compile_context>
chip_gen: v6e
topology: v6e:2x2x1
jax: 0.10.0
libtpu: 0.0.40
codegen_flags: <defaults>
</compile_context>

<pallas_src>
import jax
import jax.numpy as jnp
import numpy as np
from jax.experimental import pallas as pl
from jax.experimental.pallas import tpu as pltpu

# ----- static configuration (mirrors DNPU_Base / surrogate processor setup) ---
N_ELECTRODES = 7                       # total electrodes of the DNPU processor
N_DATA_INPUTS = 3                      # len(inputs_list[0])
N_CONTROLS = N_ELECTRODES - N_DATA_INPUTS
HIDDEN = 32                            # surrogate MLP hidden width
N_NODES = 4                            # number of DNPU activation nodes
AMPLIFICATION = 28.5                   # processor output amplification constant
BLOCK_B = 1024                         # batch-tile rows per grid step

INPUTS_LIST = [                        # data-input electrode indices per node
    [0, 1, 2],
    [1, 2, 3],
    [2, 3, 4],
    [4, 5, 6],
]
CONTROL_LIST = [                       # np.delete(arange(7), inputs_list[i])
    [e for e in range(N_ELECTRODES) if e not in inp] for inp in INPUTS_LIST
]


def _selection_matrices():
    """One-hot matrices implementing data[:, idx] = ... as matmuls."""
    sx = np.zeros((N_NODES, N_DATA_INPUTS, N_ELECTRODES), np.float32)
    sc = np.zeros((N_NODES, N_CONTROLS, N_ELECTRODES), np.float32)
    for n in range(N_NODES):
        for j, e in enumerate(INPUTS_LIST[n]):
            sx[n, j, e] = 1.0
        for j, e in enumerate(CONTROL_LIST[n]):
            sc[n, j, e] = 1.0
    return jnp.asarray(sx), jnp.asarray(sc)


def _round_up(n, m):
    return (n + m - 1) // m * m


# ------------------------------- kernel --------------------------------------
def dnpu_channels_kernel(x_ref, w1_ref, b1_ref, w2_ref, b2_ref, w3_ref, b3_ref,
                         out_ref):
    # Layer 1 (scatter + controls already folded into w1_eff / b1_eff):
    #   (TB, 3) x (3, 128) -> (TB, 128)
    h = jnp.maximum(
        jnp.dot(x_ref[...], w1_ref[...], preferred_element_type=jnp.float32)
        + b1_ref[...], 0.0)
    # Layer 2, block-diagonal across nodes: (TB, 128) x (128, 128) -> (TB, 128)
    h = jnp.maximum(
        jnp.dot(h, w2_ref[...], preferred_element_type=jnp.float32)
        + b2_ref[...], 0.0)
    # Layer 3, block-diagonal: (TB, 128) x (128, N_NODES) -> (TB, N_NODES)
    y = (jnp.dot(h, w3_ref[...], preferred_element_type=jnp.float32)
         + b3_ref[...])
    # Single full-tile store of the concatenated node outputs (torch.cat(dim=1)).
    out_ref[...] = (AMPLIFICATION * y).astype(out_ref.dtype)


# ------------------------------- wrapper --------------------------------------
@jax.jit
def dnpu_channels_forward(x, sx, sc, ctrl, w1, b1, w2, b2, w3, b3):
    assert x.shape[-1] == N_DATA_INPUTS, (
        f"size mismatch: data is {x.shape}, DNPU_Channels expecting {N_DATA_INPUTS}")
    B = x.shape[0]
    H = N_NODES * HIDDEN  # 128 — one full lane-width

    # --- batch-independent algebraic fusion (computed once per call by XLA) ---
    # per-node: full = x @ sx[i] + ctrl[i] @ sc[i]  ;  h1 = relu(full @ w1 + b1)
    #         = relu(x @ (sx[i] @ w1) + (ctrl[i] @ sc[i] @ w1 + b1))
    w1_eff = jnp.concatenate([sx[i] @ w1 for i in range(N_NODES)], axis=1)          # (3, 128)
    b1_eff = jnp.concatenate([ctrl[i] @ sc[i] @ w1 + b1
                              for i in range(N_NODES)], axis=1)                     # (1, 128)
    w2_bd = jax.scipy.linalg.block_diag(*([w2] * N_NODES))                          # (128, 128)
    b2_t = jnp.tile(b2, (1, N_NODES))                                               # (1, 128)
    w3_bd = jax.scipy.linalg.block_diag(*([w3] * N_NODES))                          # (128, 4)
    b3_t = jnp.tile(b3, (1, N_NODES))                                               # (1, 4)

    # --- batch tiling: pad B up to a multiple of the tile, slice afterwards ----
    tb = min(BLOCK_B, _round_up(B, 8))
    b_pad = _round_up(B, tb)
    x_p = jnp.pad(x, ((0, b_pad - B), (0, 0))) if b_pad != B else x

    out = pl.pallas_call(
        dnpu_channels_kernel,
        out_shape=jax.ShapeDtypeStruct((b_pad, N_NODES), jnp.float32),
        grid=(b_pad // tb,),
        in_specs=[
            pl.BlockSpec((tb, N_DATA_INPUTS), lambda i: (i, 0)),   # x tile
            pl.BlockSpec((N_DATA_INPUTS, H), lambda i: (0, 0)),    # w1_eff
            pl.BlockSpec((1, H), lambda i: (0, 0)),                # b1_eff
            pl.BlockSpec((H, H), lambda i: (0, 0)),                # w2_bd
            pl.BlockSpec((1, H), lambda i: (0, 0)),                # b2_t
            pl.BlockSpec((H, N_NODES), lambda i: (0, 0)),          # w3_bd
            pl.BlockSpec((1, N_NODES), lambda i: (0, 0)),          # b3_t
        ],
        out_specs=pl.BlockSpec((tb, N_NODES), lambda i: (i, 0)),
        compiler_params=pltpu.CompilerParams(
            dimension_semantics=("parallel",)),
    )(x_p, w1_eff, b1_eff, w2_bd, b2_t, w3_bd, b3_t)
    return out[:B]


# ------------------------------ reference -------------------------------------
def reference_forward(x, sx, sc, ctrl, w1, b1, w2, b2, w3, b3):
    """Pure-JAX reference with the original per-node semantics."""
    outs = []
    for i in range(N_NODES):
        full = x @ sx[i] + ctrl[i] @ sc[i]
        h = jax.nn.relu(full @ w1 + b1)
        h = jax.nn.relu(h @ w2 + b2)
        outs.append(AMPLIFICATION * (h @ w3 + b3))
    return jnp.concatenate(outs, axis=1)


if __name__ == "__main__":
    key = jax.random.PRNGKey(0)
    kx, kc, k1, k2, k3, kb1, kb2, kb3 = jax.random.split(key, 8)

    B = 16
    # deterministic example input + parameters
    x = jax.random.uniform(kx, (B, N_DATA_INPUTS), jnp.float32, -0.3, 0.3)
    # learnable control voltages, one set per node, within a DNPU-like range
    ctrl = jax.random.uniform(kc, (N_NODES, 1, N_CONTROLS), jnp.float32, -0.7, 0.3)
    # shared surrogate-MLP weights (processor parameters are frozen in DNPU_Base)
    w1 = jax.random.normal(k1, (N_ELECTRODES, HIDDEN), jnp.float32) / np.sqrt(N_ELECTRODES)
    b1 = jax.random.normal(kb1, (1, HIDDEN), jnp.float32) * 0.1
    w2 = jax.random.normal(k2, (HIDDEN, HIDDEN), jnp.float32) / np.sqrt(HIDDEN)
    b2 = jax.random.normal(kb2, (1, HIDDEN), jnp.float32) * 0.1
    w3 = jax.random.normal(k3, (HIDDEN, 1), jnp.float32) / np.sqrt(HIDDEN)
    b3 = jax.random.normal(kb3, (1, 1), jnp.float32) * 0.1

    sx, sc = _selection_matrices()

    out = dnpu_channels_forward(x, sx, sc, ctrl, w1, b1, w2, b2, w3, b3)
    out = jax.block_until_ready(out)

    ref = reference_forward(x, sx, sc, ctrl, w1, b1, w2, b2, w3, b3)
    assert out.shape == (B, N_NODES), out.shape
    np.testing.assert_allclose(np.asarray(out), np.asarray(ref),
                               rtol=2e-2, atol=2e-2)
    print("KERNEL_OK")
</pallas_src>

<mosaic_0001>
module attributes {stable_mosaic.version = 11 : i64} {
  func.func @dnpu_channels_kernel(%arg0: i32, %arg1: memref<16x3xf32, #tpu.memory_space<vmem>>, %arg2: memref<3x128xf32, #tpu.memory_space<vmem>>, %arg3: memref<1x128xf32, #tpu.memory_space<vmem>>, %arg4: memref<128x128xf32, #tpu.memory_space<vmem>>, %arg5: memref<1x128xf32, #tpu.memory_space<vmem>>, %arg6: memref<128x4xf32, #tpu.memory_space<vmem>>, %arg7: memref<1x4xf32, #tpu.memory_space<vmem>>, %arg8: memref<16x4xf32, #tpu.memory_space<vmem>>) attributes {dimension_semantics = [#tpu.dimension_semantics<parallel>], iteration_bounds = array<i64: 1>, scalar_prefetch = 0 : i64, scratch_operands = 0 : i64, tpu.core_type = #tpu.core_type<tc>, window_params = [{transform_indices = @transform_0, window_bounds = array<i64: 16, 3>}, {pipeline_mode = #tpu.pipeline_mode<synchronous>, transform_indices = @transform_1, window_bounds = array<i64: 3, 128>}, {pipeline_mode = #tpu.pipeline_mode<synchronous>, transform_indices = @transform_2, window_bounds = array<i64: 1, 128>}, {pipeline_mode = #tpu.pipeline_mode<synchronous>, transform_indices = @transform_3, window_bounds = array<i64: 128, 128>}, {pipeline_mode = #tpu.pipeline_mode<synchronous>, transform_indices = @transform_4, window_bounds = array<i64: 1, 128>}, {pipeline_mode = #tpu.pipeline_mode<synchronous>, transform_indices = @transform_5, window_bounds = array<i64: 128, 4>}, {pipeline_mode = #tpu.pipeline_mode<synchronous>, transform_indices = @transform_6, window_bounds = array<i64: 1, 4>}, {transform_indices = @transform_7, window_bounds = array<i64: 16, 4>}]} {
    %c0 = arith.constant 0 : index
    %c0_0 = arith.constant 0 : index
    %0 = vector.load %arg1[%c0, %c0_0] : memref<16x3xf32, #tpu.memory_space<vmem>>, vector<16x3xf32>
    %c0_1 = arith.constant 0 : index
    %c0_2 = arith.constant 0 : index
    %1 = vector.load %arg2[%c0_1, %c0_2] : memref<3x128xf32, #tpu.memory_space<vmem>>, vector<3x128xf32>
    %cst = arith.constant dense<0.000000e+00> : vector<16x128xf32>
    %2 = tpu.matmul %0, %1, %cst {dimension_numbers = #tpu.dot_dimension_numbers<[1], [0], [0], [1], [0, 0, 1, 1], [], []>} : vector<16x3xf32>, vector<3x128xf32>, vector<16x128xf32> -> vector<16x128xf32>
    %c0_3 = arith.constant 0 : index
    %c0_4 = arith.constant 0 : index
    %3 = vector.load %arg3[%c0_3, %c0_4] : memref<1x128xf32, #tpu.memory_space<vmem>>, vector<1x128xf32>
    %4 = vector.broadcast %3 : vector<1x128xf32> to vector<16x128xf32>
    %5 = arith.addf %2, %4 : vector<16x128xf32>
    %cst_5 = arith.constant 0.000000e+00 : f32
    %6 = vector.broadcast %cst_5 : f32 to vector<16x128xf32>
    %7 = arith.maximumf %5, %6 : vector<16x128xf32>
    %c0_6 = arith.constant 0 : index
    %c0_7 = arith.constant 0 : index
    %8 = vector.load %arg4[%c0_6, %c0_7] : memref<128x128xf32, #tpu.memory_space<vmem>>, vector<128x128xf32>
    %cst_8 = arith.constant dense<0.000000e+00> : vector<16x128xf32>
    %9 = tpu.matmul %7, %8, %cst_8 {dimension_numbers = #tpu.dot_dimension_numbers<[1], [0], [0], [1], [0, 0, 1, 1], [], []>} : vector<16x128xf32>, vector<128x128xf32>, vector<16x128xf32> -> vector<16x128xf32>
    %c0_9 = arith.constant 0 : index
    %c0_10 = arith.constant 0 : index
    %10 = vector.load %arg5[%c0_9, %c0_10] : memref<1x128xf32, #tpu.memory_space<vmem>>, vector<1x128xf32>
    %11 = vector.broadcast %10 : vector<1x128xf32> to vector<16x128xf32>
    %12 = arith.addf %9, %11 : vector<16x128xf32>
    %cst_11 = arith.constant 0.000000e+00 : f32
    %13 = vector.broadcast %cst_11 : f32 to vector<16x128xf32>
    %14 = arith.maximumf %12, %13 : vector<16x128xf32>
    %c0_12 = arith.constant 0 : index
    %c0_13 = arith.constant 0 : index
    %15 = vector.load %arg6[%c0_12, %c0_13] : memref<128x4xf32, #tpu.memory_space<vmem>>, vector<128x4xf32>
    %cst_14 = arith.constant dense<0.000000e+00> : vector<16x4xf32>
    %16 = tpu.matmul %14, %15, %cst_14 {dimension_numbers = #tpu.dot_dimension_numbers<[1], [0], [0], [1], [0, 0, 1, 1], [], []>} : vector<16x128xf32>, vector<128x4xf32>, vector<16x4xf32> -> vector<16x4xf32>
    %c0_15 = arith.constant 0 : index
    %c0_16 = arith.constant 0 : index
    %17 = vector.load %arg7[%c0_15, %c0_16] : memref<1x4xf32, #tpu.memory_space<vmem>>, vector<1x4xf32>
    %18 = vector.broadcast %17 : vector<1x4xf32> to vector<16x4xf32>
    %19 = arith.addf %16, %18 : vector<16x4xf32>
    %cst_17 = arith.constant 2.850000e+01 : f32
    %20 = vector.broadcast %cst_17 : f32 to vector<16x4xf32>
    %21 = arith.mulf %20, %19 : vector<16x4xf32>
    %c0_18 = arith.constant 0 : index
    %c0_19 = arith.constant 0 : index
    %22 = vector.load %arg8[%c0_18, %c0_19] : memref<16x4xf32, #tpu.memory_space<vmem>>, vector<16x4xf32>
    tpu.vector_store %arg8[%c0_18, %c0_19], %21 {strides = array<i32>} : memref<16x4xf32, #tpu.memory_space<vmem>>, vector<16x4xf32>,
    return
  }
  func.func @transform_0(%arg0: i32) -> (i32, i32) {
    %c0_i32 = arith.constant 0 : i32
    %c0_i32_0 = arith.constant 0 : i32
    return %arg0, %c0_i32 : i32, i32
  }
  func.func @transform_1(%arg0: i32) -> (i32, i32) {
    %c0_i32 = arith.constant 0 : i32
    %c0_i32_0 = arith.constant 0 : i32
    %c0_i32_1 = arith.constant 0 : i32
    return %c0_i32, %c0_i32_0 : i32, i32
  }
  func.func @transform_2(%arg0: i32) -> (i32, i32) {
    %c0_i32 = arith.constant 0 : i32
    %c0_i32_0 = arith.constant 0 : i32
    %c0_i32_1 = arith.constant 0 : i32
    return %c0_i32, %c0_i32_0 : i32, i32
  }
  func.func @transform_3(%arg0: i32) -> (i32, i32) {
    %c0_i32 = arith.constant 0 : i32
    %c0_i32_0 = arith.constant 0 : i32
    %c0_i32_1 = arith.constant 0 : i32
    return %c0_i32, %c0_i32_0 : i32, i32
  }
  func.func @transform_4(%arg0: i32) -> (i32, i32) {
    %c0_i32 = arith.constant 0 : i32
    %c0_i32_0 = arith.constant 0 : i32
    %c0_i32_1 = arith.constant 0 : i32
    return %c0_i32, %c0_i32_0 : i32, i32
  }
  func.func @transform_5(%arg0: i32) -> (i32, i32) {
    %c0_i32 = arith.constant 0 : i32
    %c0_i32_0 = arith.constant 0 : i32
    %c0_i32_1 = arith.constant 0 : i32
    return %c0_i32, %c0_i32_0 : i32, i32
  }
  func.func @transform_6(%arg0: i32) -> (i32, i32) {
    %c0_i32 = arith.constant 0 : i32
    %c0_i32_0 = arith.constant 0 : i32
    %c0_i32_1 = arith.constant 0 : i32
    return %c0_i32, %c0_i32_0 : i32, i32
  }
  func.func @transform_7(%arg0: i32) -> (i32, i32) {
    %c0_i32 = arith.constant 0 : i32
    %c0_i32_0 = arith.constant 0 : i32
    return %arg0, %c0_i32 : i32, i32
  }
}

</mosaic_0001>

<llo_original>
// kernel: dnpu_channels_forward.1
$region0: #{dnpu_channels_forward.1}
  #allocation0 [shape = 'u32[]', space=smem, size = 0x4, offset = 0x4, fixed_abs, tag = 'smem constant byte address 0x4 - core index']
  #allocation1 [shape = 'u32[144,128]{1,0:T(1,128)}', space=vmem, size = 0x12000, scoped, tag = 'internal scratch']
  %s0 = inlined_call_operand.vmem [shape: f32[16,3], index: 0, kind: input, shape index: {}]
  %s1 = inlined_call_operand.vmem [shape: f32[3,128], index: 1, kind: input, shape index: {}]
  %s2 = inlined_call_operand.vmem [shape: f32[1,128], index: 2, kind: input, shape index: {}]
  %s3 = inlined_call_operand.vmem [shape: f32[128,128], index: 3, kind: input, shape index: {}]
  %s4 = inlined_call_operand.vmem [shape: f32[1,128], index: 4, kind: input, shape index: {}]
  %s5 = inlined_call_operand.vmem [shape: f32[128,4], index: 5, kind: input, shape index: {}]
  %s6 = inlined_call_operand.vmem [shape: f32[1,4], index: 6, kind: input, shape index: {}]
  %s7 = inlined_call_operand.vmem [shape: f32[16,4], index: 7, kind: output, shape index: {}]
  %s8 = sld [smem:[#allocation0]]
  $region38: #{dnpu_channels_forward.1} parent=0
    _
  %s10 = ssub.s32 1, %s8
  %s11 = scalar_select 0, %s10, %s8
  // Predicated region
  $region2: #{dnpu_channels_forward.1} parent=0 // pred_check
    _
  $region3: #{dnpu_channels_forward.1} parent=0 // pred_check_branch
    %13 = sbr.rel (0) target = $region5
  $region4: #{dnpu_channels_forward.1} parent=0 // pred_region
    _
  $region5: #{dnpu_channels_forward.1} parent=0 // pred_fallthru
    _
  // Predicated region
  $region6: #{dnpu_channels_forward.1} parent=0 // pred_check
    _
  $region7: #{dnpu_channels_forward.1} parent=0 // pred_check_branch
    %15 = sbr.rel (0) target = $region9
  $region8: #{dnpu_channels_forward.1} parent=0 // pred_region
    _
  $region9: #{dnpu_channels_forward.1} parent=0 // pred_fallthru
    _
  // Predicated region
  $region10: #{dnpu_channels_forward.1} parent=0 // pred_check
    _
  $region11: #{dnpu_channels_forward.1} parent=0 // pred_check_branch
    %17 = sbr.rel (0) target = $region13
  $region12: #{dnpu_channels_forward.1} parent=0 // pred_region
    _
  $region13: #{dnpu_channels_forward.1} parent=0 // pred_fallthru
    _
  // Predicated region
  $region14: #{dnpu_channels_forward.1} parent=0 // pred_check
    _
  $region15: #{dnpu_channels_forward.1} parent=0 // pred_check_branch
    %19 = sbr.rel (0) target = $region17
  $region16: #{dnpu_channels_forward.1} parent=0 // pred_region
    _
  $region17: #{dnpu_channels_forward.1} parent=0 // pred_fallthru
    _
  // Predicated region
  $region18: #{dnpu_channels_forward.1} parent=0 // pred_check
    _
  $region19: #{dnpu_channels_forward.1} parent=0 // pred_check_branch
    %21 = sbr.rel (0) target = $region21
  $region20: #{dnpu_channels_forward.1} parent=0 // pred_region
    _
  $region21: #{dnpu_channels_forward.1} parent=0 // pred_fallthru
    _
  // Predicated region
  $region22: #{dnpu_channels_forward.1} parent=0 // pred_check
    _
  $region23: #{dnpu_channels_forward.1} parent=0 // pred_check_branch
    %23 = sbr.rel (0) target = $region25
  $region24: #{dnpu_channels_forward.1} parent=0 // pred_region
    _
  $region25: #{dnpu_channels_forward.1} parent=0 // pred_fallthru
    _
  // Predicated region
  $region26: #{dnpu_channels_forward.1} parent=0 // pred_check
    _
  $region27: #{dnpu_channels_forward.1} parent=0 // pred_check_branch
    %25 = sbr.rel (0) target = $region29
  $region28: #{dnpu_channels_forward.1} parent=0 // pred_region
    _
  $region29: #{dnpu_channels_forward.1} parent=0 // pred_fallthru
    _
  %v26 = vld [vmem:[%s0] sm:$0xff]
  %v27 = vld [vmem:[%s0 + $0x8] sm:$0xff]
  %v28 = vld [vmem:[%s1] sm:$0x7]
  %v29 = vld [vmem:[%s2] sm:$0x1]
  %v31 = vlaneseq
  %v32 = vshrl.u32 %v31, 7
  %v33 = vsub.s32 0, %v32
  %v34 = vrot.slane %v29, %v33
  %vm36 = vcmask 23552
  %v38 = vsel %vm36, %v26, 0
  %v41 = vsel %vm36, %v27, 0
  %vm43 = vcmask 1042432
  %v45 = vsel %vm43, %v28, 0
  %47 = vmatprep.subr.mxu0 0.0
  %48 = vmatpush1.msra.mxu0 0.0
  %49 = vmatprep.subr.mxu0 0.0
  %50 = vmatpush1.msra.mxu0 0.0
  %51 = vmatprep.subr.mxu0 0.0
  %52 = vmatpush1.msra.mxu0 0.0
  %53 = vmatprep.subr.mxu0 0.0
  %54 = vmatpush1.msra.mxu0 0.0
  %55 = vmatprep.subr.mxu0 0.0
  %56 = vmatpush1.msra.mxu0 0.0
  %57 = vmatprep.subr.mxu0 0.0
  %58 = vmatpush1.msra.mxu0 0.0
  %59 = vmatprep.subr.mxu0 0.0
  %60 = vmatpush1.msra.mxu0 0.0
  %61 = vmatprep.subr.mxu0 0.0
  %62 = vmatpush1.msra.mxu0 0.0
  %63 = vmatprep.subr.mxu0 0.0
  %64 = vmatpush1.msra.mxu0 0.0
  %65 = vmatprep.subr.mxu0 0.0
  %66 = vmatpush1.msra.mxu0 0.0
  %67 = vmatprep.subr.mxu0 0.0
  %68 = vmatpush1.msra.mxu0 0.0
  %69 = vmatprep.subr.mxu0 0.0
  %70 = vmatpush1.msra.mxu0 0.0
  %71 = vmatprep.subr.mxu0 0.0
  %72 = vmatpush1.msra.mxu0 0.0
  %73 = vmatprep.subr.mxu0 0.0
  %74 = vmatpush1.msra.mxu0 0.0
  %75 = vmatprep.subr.mxu0 0.0
  %76 = vmatpush1.msra.mxu0 0.0
  %77 = vmatprep.subr.mxu0 0.0
  %78 = vmatpush1.msra.mxu0 %v45
  %79 = vmatprep.subr.mxu0 0.0
  %80 = vmatpush2.msra.mxu0 0.0
  %81 = vmatprep.subr.mxu0 0.0
  %82 = vmatpush2.msra.mxu0 0.0
  %83 = vmatprep.subr.mxu0 0.0
  %84 = vmatpush2.msra.mxu0 0.0
  %85 = vmatprep.subr.mxu0 0.0
  %86 = vmatpush2.msra.mxu0 0.0
  %87 = vmatprep.subr.mxu0 0.0
  %88 = vmatpush2.msra.mxu0 0.0
  %89 = vmatprep.subr.mxu0 0.0
  %90 = vmatpush2.msra.mxu0 0.0
  %91 = vmatprep.subr.mxu0 0.0
  %92 = vmatpush2.msra.mxu0 0.0
  %93 = vmatprep.subr.mxu0 0.0
  %94 = vmatpush2.msra.mxu0 0.0
  %95 = vmatprep.subr.mxu0 0.0
  %96 = vmatpush2.msra.mxu0 0.0
  %97 = vmatprep.subr.mxu0 0.0
  %98 = vmatpush2.msra.mxu0 0.0
  %99 = vmatprep.subr.mxu0 0.0
  %100 = vmatpush2.msra.mxu0 0.0
  %101 = vmatprep.subr.mxu0 0.0
  %102 = vmatpush2.msra.mxu0 0.0
  %103 = vmatprep.subr.mxu0 0.0
  %104 = vmatpush2.msra.mxu0 0.0
  %105 = vmatprep.subr.mxu0 0.0
  %106 = vmatpush2.msra.mxu0 0.0
  %107 = vmatprep.subr.mxu0 0.0
  %108 = vmatpush2.msra.mxu0 0.0
  %109 = vmatprep.subr.mxu0 0.0
  %110 = vmatpush2.msra.mxu0 0.0
  %111 = vmatprep.mubr.f32.mxu0 0.0
  %112 = vmatmul.mubr.f32.gmra.mxu0 %v38
  %v113 = vpop.f32.mrf.mxu0
  %v114 = vadd.f32 %v34, %v113
  %v115 = vpop.f32.mrf.mxu0
  %116 = vmatprep.mubr.f32.mxu0 0.0
  %117 = vmatmul.mubr.f32.gmra.mxu0 %v41
  %v118 = vpop.f32.mrf.mxu0
  %v119 = vadd.f32 %v34, %v118
  %v120 = vpop.f32.mrf.mxu0
  %121 = vdwg.mxu0
  %v122 = vmax.f32 %v114, 0.0
  %v123 = vmax.f32 %v119, 0.0
  %v124 = vld [vmem:[%s3] sm:$0xff]
  %v125 = vld [vmem:[%s3 + $0x8] sm:$0xff]
  %v126 = vld [vmem:[%s3 + $0x10] sm:$0xff]
  %v127 = vld [vmem:[%s3 + $0x18] sm:$0xff]
  %v128 = vld [vmem:[%s3 + $0x20] sm:$0xff]
  %v129 = vld [vmem:[%s3 + $0x28] sm:$0xff]
  %v130 = vld [vmem:[%s3 + $0x30] sm:$0xff]
  %v131 = vld [vmem:[%s3 + $0x38] sm:$0xff]
  %v132 = vld [vmem:[%s3 + $0x40] sm:$0xff]
  %v133 = vld [vmem:[%s3 + $0x48] sm:$0xff]
  %v134 = vld [vmem:[%s3 + $0x50] sm:$0xff]
  %v135 = vld [vmem:[%s3 + $0x58] sm:$0xff]
  %v136 = vld [vmem:[%s3 + $0x60] sm:$0xff]
  %v137 = vld [vmem:[%s3 + $0x68] sm:$0xff]
  %v138 = vld [vmem:[%s3 + $0x70] sm:$0xff]
  %v139 = vld [vmem:[%s3 + $0x78] sm:$0xff]
  %v140 = vld [vmem:[%s4] sm:$0x1]
  %v142 = vlaneseq
  %v143 = vshrl.u32 %v142, 7
  %v144 = vsub.s32 0, %v143
  %v145 = vrot.slane %v140, %v144
  %147 = vmatprep.subr.mxu0 0.0
  %148 = vmatpush1.msra.mxu0 %v139
  %149 = vmatprep.subr.mxu0 0.0
  %150 = vmatpush1.msra.mxu0 %v138
  %151 = vmatprep.subr.mxu0 0.0
  %152 = vmatpush1.msra.mxu0 %v137
  %153 = vmatprep.subr.mxu0 0.0
  %154 = vmatpush1.msra.mxu0 %v136
  %155 = vmatprep.subr.mxu0 0.0
  %156 = vmatpush1.msra.mxu0 %v135
  %157 = vmatprep.subr.mxu0 0.0
  %158 = vmatpush1.msra.mxu0 %v134
  %159 = vmatprep.subr.mxu0 0.0
  %160 = vmatpush1.msra.mxu0 %v133
  %161 = vmatprep.subr.mxu0 0.0
  %162 = vmatpush1.msra.mxu0 %v132
  %163 = vmatprep.subr.mxu0 0.0
  %164 = vmatpush1.msra.mxu0 %v131
  %165 = vmatprep.subr.mxu0 0.0
  %166 = vmatpush1.msra.mxu0 %v130
  %167 = vmatprep.subr.mxu0 0.0
  %168 = vmatpush1.msra.mxu0 %v129
  %169 = vmatprep.subr.mxu0 0.0
  %170 = vmatpush1.msra.mxu0 %v128
  %171 = vmatprep.subr.mxu0 0.0
  %172 = vmatpush1.msra.mxu0 %v127
  %173 = vmatprep.subr.mxu0 0.0
  %174 = vmatpush1.msra.mxu0 %v126
  %175 = vmatprep.subr.mxu0 0.0
  %176 = vmatpush1.msra.mxu0 %v125
  %177 = vmatprep.subr.mxu0 0.0
  %178 = vmatpush1.msra.mxu0 %v124
  %179 = vmatprep.subr.mxu0 0.0
  %180 = vmatpush2.msra.mxu0 0.0
  %181 = vmatprep.subr.mxu0 0.0
  %182 = vmatpush2.msra.mxu0 0.0
  %183 = vmatprep.subr.mxu0 0.0
  %184 = vmatpush2.msra.mxu0 0.0
  %185 = vmatprep.subr.mxu0 0.0
  %186 = vmatpush2.msra.mxu0 0.0
  %187 = vmatprep.subr.mxu0 0.0
  %188 = vmatpush2.msra.mxu0 0.0
  %189 = vmatprep.subr.mxu0 0.0
  %190 = vmatpush2.msra.mxu0 0.0
  %191 = vmatprep.subr.mxu0 0.0
  %192 = vmatpush2.msra.mxu0 0.0
  %193 = vmatprep.subr.mxu0 0.0
  %194 = vmatpush2.msra.mxu0 0.0
  %195 = vmatprep.subr.mxu0 0.0
  %196 = vmatpush2.msra.mxu0 0.0
  %197 = vmatprep.subr.mxu0 0.0
  %198 = vmatpush2.msra.mxu0 0.0
  %199 = vmatprep.subr.mxu0 0.0
  %200 = vmatpush2.msra.mxu0 0.0
  %201 = vmatprep.subr.mxu0 0.0
  %202 = vmatpush2.msra.mxu0 0.0
  %203 = vmatprep.subr.mxu0 0.0
  %204 = vmatpush2.msra.mxu0 0.0
  %205 = vmatprep.subr.mxu0 0.0
  %206 = vmatpush2.msra.mxu0 0.0
  %207 = vmatprep.subr.mxu0 0.0
  %208 = vmatpush2.msra.mxu0 0.0
  %209 = vmatprep.subr.mxu0 0.0
  %210 = vmatpush2.msra.mxu0 0.0
  %211 = vmatprep.mubr.f32.mxu0 0.0
  %212 = vmatmul.mubr.f32.gmra.mxu0 %v122
  %v213 = vpop.f32.mrf.mxu0
  %v214 = vadd.f32 %v145, %v213
  %v215 = vpop.f32.mrf.mxu0
  %216 = vmatprep.mubr.f32.mxu0 0.0
  %217 = vmatmul.mubr.f32.gmra.mxu0 %v123
  %v218 = vpop.f32.mrf.mxu0
  %v219 = vadd.f32 %v145, %v218
  %v220 = vpop.f32.mrf.mxu0
  %221 = vdwg.mxu0
  %v222 = vmax.f32 %v214, 0.0
  %v223 = vmax.f32 %v219, 0.0
  %v224 = vld [vmem:[%s5] sm:$0xff]
  %v225 = vld [vmem:[%s5 + $0x8] sm:$0xff]
  %v226 = vld [vmem:[%s5 + $0x10] sm:$0xff]
  %v227 = vld [vmem:[%s5 + $0x18] sm:$0xff]
  %v228 = vld [vmem:[%s5 + $0x20] sm:$0xff]
  %v229 = vld [vmem:[%s5 + $0x28] sm:$0xff]
  %v230 = vld [vmem:[%s5 + $0x30] sm:$0xff]
  %v231 = vld [vmem:[%s5 + $0x38] sm:$0xff]
  %v232 = vld [vmem:[%s5 + $0x40] sm:$0xff]
  %v233 = vld [vmem:[%s5 + $0x48] sm:$0xff]
  %v234 = vld [vmem:[%s5 + $0x50] sm:$0xff]
  %v235 = vld [vmem:[%s5 + $0x58] sm:$0xff]
  %v236 = vld [vmem:[%s5 + $0x60] sm:$0xff]
  %v237 = vld [vmem:[%s5 + $0x68] sm:$0xff]
  %v238 = vld [vmem:[%s5 + $0x70] sm:$0xff]
  %v239 = vld [vmem:[%s5 + $0x78] sm:$0xff]
  %v240 = vld [vmem:[%s6] sm:$0x1]
  %v242 = vlaneseq
  %v243 = vshrl.u32 %v242, 7
  %v244 = vsub.s32 0, %v243
  %v245 = vrot.slane %v240, %v244
  %247 = vmatprep.subr.mxu0 0.0
  %248 = vmatpush1.msra.mxu0 %v239
  %249 = vmatprep.subr.mxu0 0.0
  %250 = vmatpush1.msra.mxu0 %v238
  %251 = vmatprep.subr.mxu0 0.0
  %252 = vmatpush1.msra.mxu0 %v237
  %253 = vmatprep.subr.mxu0 0.0
  %254 = vmatpush1.msra.mxu0 %v236
  %255 = vmatprep.subr.mxu0 0.0
  %256 = vmatpush1.msra.mxu0 %v235
  %257 = vmatprep.subr.mxu0 0.0
  %258 = vmatpush1.msra.mxu0 %v234
  %259 = vmatprep.subr.mxu0 0.0
  %260 = vmatpush1.msra.mxu0 %v233
  %261 = vmatprep.subr.mxu0 0.0
  %262 = vmatpush1.msra.mxu0 %v232
  %263 = vmatprep.subr.mxu0 0.0
  %264 = vmatpush1.msra.mxu0 %v231
  %265 = vmatprep.subr.mxu0 0.0
  %266 = vmatpush1.msra.mxu0 %v230
  %267 = vmatprep.subr.mxu0 0.0
  %268 = vmatpush1.msra.mxu0 %v229
  %269 = vmatprep.subr.mxu0 0.0
  %270 = vmatpush1.msra.mxu0 %v228
  %271 = vmatprep.subr.mxu0 0.0
  %272 = vmatpush1.msra.mxu0 %v227
  %273 = vmatprep.subr.mxu0 0.0
  %274 = vmatpush1.msra.mxu0 %v226
  %275 = vmatprep.subr.mxu0 0.0
  %276 = vmatpush1.msra.mxu0 %v225
  %277 = vmatprep.subr.mxu0 0.0
  %278 = vmatpush1.msra.mxu0 %v224
  %279 = vmatprep.subr.mxu0 0.0
  %280 = vmatpush2.msra.mxu0 0.0
  %281 = vmatprep.subr.mxu0 0.0
  %282 = vmatpush2.msra.mxu0 0.0
  %283 = vmatprep.subr.mxu0 0.0
  %284 = vmatpush2.msra.mxu0 0.0
  %285 = vmatprep.subr.mxu0 0.0
  %286 = vmatpush2.msra.mxu0 0.0
  %287 = vmatprep.subr.mxu0 0.0
  %288 = vmatpush2.msra.mxu0 0.0
  %289 = vmatprep.subr.mxu0 0.0
  %290 = vmatpush2.msra.mxu0 0.0
  %291 = vmatprep.subr.mxu0 0.0
  %292 = vmatpush2.msra.mxu0 0.0
  %293 = vmatprep.subr.mxu0 0.0
  %294 = vmatpush2.msra.mxu0 0.0
  %295 = vmatprep.subr.mxu0 0.0
  %296 = vmatpush2.msra.mxu0 0.0
  %297 = vmatprep.subr.mxu0 0.0
  %298 = vmatpush2.msra.mxu0 0.0
  %299 = vmatprep.subr.mxu0 0.0
  %300 = vmatpush2.msra.mxu0 0.0
  %301 = vmatprep.subr.mxu0 0.0
  %302 = vmatpush2.msra.mxu0 0.0
  %303 = vmatprep.subr.mxu0 0.0
  %304 = vmatpush2.msra.mxu0 0.0
  %305 = vmatprep.subr.mxu0 0.0
  %306 = vmatpush2.msra.mxu0 0.0
  %307 = vmatprep.subr.mxu0 0.0
  %308 = vmatpush2.msra.mxu0 0.0
  %309 = vmatprep.subr.mxu0 0.0
  %310 = vmatpush2.msra.mxu0 0.0
  %311 = vmatprep.mubr.f32.mxu0 0.0
  %312 = vmatmul.mubr.f32.gmra.mxu0 %v222
  %v313 = vpop.f32.mrf.mxu0
  %v314 = vadd.f32 %v245, %v313
  %v315 = vpop.f32.mrf.mxu0
  %316 = vmatprep.mubr.f32.mxu0 0.0
  %317 = vmatmul.mubr.f32.gmra.mxu0 %v223
  %v318 = vpop.f32.mrf.mxu0
  %v319 = vadd.f32 %v245, %v318
  %v320 = vpop.f32.mrf.mxu0
  %321 = vdwg.mxu0
  %v322 = vmul.f32 %v314, 28.5
  %v323 = vmul.f32 %v319, 28.5
  %vm324 = vcmask 31744
  %325 = vst.msk [vmem:[%s7] sm:$0xff] %vm324, %v322
  %326 = vst.msk [vmem:[%s7 + $0x8] sm:$0xff] %vm324, %v323
  // Predicated region
  $region30: #{dnpu_channels_forward.1} parent=0 // pred_check
    _
  $region31: #{dnpu_channels_forward.1} parent=0 // pred_check_branch
    %328 = sbr.rel (0) target = $region33
  $region32: #{dnpu_channels_forward.1} parent=0 // pred_region
    _
  $region33: #{dnpu_channels_forward.1} parent=0 // pred_fallthru
    _
  // Predicated region
  $region34: #{dnpu_channels_forward.1} parent=0 // pred_check
    _
  $region35: #{dnpu_channels_forward.1} parent=0 // pred_check_branch
    %330 = sbr.rel (0) target = $region37
  $region36: #{dnpu_channels_forward.1} parent=0 // pred_region
    _
  $region37: #{dnpu_channels_forward.1} parent=0 // pred_fallthru
    _

</llo_original>
